<compile_context>
chip_gen: v6e
topology: v6e:2x2x1
jax: 0.10.0
libtpu: 0.0.40
codegen_flags: <defaults>
</compile_context>

<pallas_src>
import functools

import jax
import jax.numpy as jnp
from jax.experimental import pallas as pl
from jax.experimental.pallas import tpu as pltpu


def _up_conv_kernel(x_ref, w_ref, scale_ref, shift_ref, o_ref, *, wp, th, span):
    """One (image, row-tile) step of upsample(x2)+conv3x3+BN(eval)+ReLU.

    x_ref:     (1, S, Cin) bf16      zero-padded input image, spatial dims
                                     flattened row-major as (H+2)*(W+2) (+ slack).
    w_ref:     (9*Cin, 4*Cout) bf16  folded sub-pixel weights; row = (dy*3+dx)*Cin+ci,
                                     col = (2a+b)*Cout+co.
    scale_ref: (1, 4*Cout) f32       folded BN scale (tiled over the 4 parities).
    shift_ref: (1, 4*Cout) f32       folded BN shift + conv bias (tiled).
    o_ref:     (1, th*wp, 4*Cout) bf16  wide-frame rows for this tile;
                                     flat row r = i_local*wp + jj (jj < W valid),
                                     lane q = (2a+b)*Cout + co.
    """
    t = pl.program_id(1)
    n_rows = th * wp

    # One 8-aligned dynamic load of this tile's halo window; every conv tap is a
    # *static* contiguous sublane slice of it.
    start = pl.multiple_of(t * n_rows, 8)
    xwin = x_ref[0, pl.ds(start, span), :]                    # (span, Cin) bf16

    # Build the 9-tap im2col LHS on the lane (contraction) axis: K = 9*Cin.
    taps = [xwin[dy * wp + dx: dy * wp + dx + n_rows, :]
            for dy in range(3) for dx in range(3)]            # 9 x (n_rows, Cin)
    lhs = jnp.concatenate(taps, axis=-1)                      # (n_rows, 9*Cin) bf16

    # Single MXU pass: all four parities land in the output lane dimension.
    y = jnp.dot(lhs, w_ref[...], preferred_element_type=jnp.float32)  # (n_rows, 4*Cout)
    y = jnp.maximum(y * scale_ref[0] + shift_ref[0], 0.0)     # bias + BN + ReLU
    o_ref[0] = y.astype(o_ref.dtype)                          # one lane-dense store


def _pick_row_tile(H, Wp, Cin, Cout, budget=6 << 20):
    """Largest row tile (multiple of 8, dividing H) whose per-step working set
    (bf16 im2col LHS + f32 accumulator + 2x bf16 out block) fits the budget."""
    divisors = [c for c in (64, 32, 16, 8) if H % c == 0 and H // c >= 2]
    for cand in divisors:                                      # largest first
        rows = cand * Wp
        work = rows * (9 * Cin * 2 + 4 * Cout * 4 + 2 * 4 * Cout * 2)
        if work <= budget:
            return cand
    return divisors[-1] if divisors else H                     # smallest divisor / whole image


@jax.jit
def up_conv_forward(x_nchw, weight_oihw, bias, gamma, beta, run_mean, run_var,
                    eps=1e-5):
    """Forward of up_conv. x_nchw: (N, Cin, H, W) f32. Returns (N, Cout, 2H, 2W) f32."""
    N, Cin, H, W = x_nchw.shape
    Cout = weight_oihw.shape[0]
    Wp = W + 2
    TH = _pick_row_tile(H, Wp, Cin, Cout)
    n_row_tiles = H // TH

    # Halo window length per row tile (rounded to a sublane multiple) and padded
    # flattened-spatial length S so the last tile's window stays in-bounds.
    span = (TH + 2) * Wp + 2
    span = ((span + 7) // 8) * 8
    S = (n_row_tiles - 1) * TH * Wp + span

    # --- input glue (one pass over the SMALL original input):
    #     NCHW -> NHWC, zero-pad by 1, flatten spatial, cast bf16, pad slack.
    x_nhwc = jnp.transpose(x_nchw, (0, 2, 3, 1))                        # (N, H, W, Cin)
    x_pad = jnp.pad(x_nhwc, ((0, 0), (1, 1), (1, 1), (0, 0)))           # (N, H+2, W+2, Cin)
    x_flat = x_pad.reshape(N, (H + 2) * Wp, Cin).astype(jnp.bfloat16)
    x_flat = jnp.pad(x_flat, ((0, 0), (0, S - (H + 2) * Wp), (0, 0)))   # (N, S, Cin)

    # --- fold the 3x3 weights into a (9*Cin, 4*Cout) sub-pixel matrix.
    # For output parity (a, b), tap (ky, kx) of the 3x3 kernel reads padded-input
    # row offset dy = (a+ky+1)//2 and col offset dx = (b+kx+1)//2; unused
    # (dy, dx, parity) combinations stay zero.
    w_t = jnp.transpose(weight_oihw, (2, 3, 1, 0)).astype(jnp.float32)  # (ky,kx,Cin,Cout)
    w9 = jnp.zeros((3, 3, Cin, 2, 2, Cout), jnp.float32)                # (dy,dx,ci,a,b,co)
    for a in range(2):
        for b in range(2):
            for ky in range(3):
                for kx in range(3):
                    dy = (a + ky + 1) // 2
                    dx = (b + kx + 1) // 2
                    w9 = w9.at[dy, dx, :, a, b, :].add(w_t[ky, kx])
    w9 = w9.reshape(9 * Cin, 4 * Cout).astype(jnp.bfloat16)

    # --- fold conv bias + eval-mode BN into per-channel scale/shift (f32),
    #     tiled across the four parity lane-groups.
    inv_std = 1.0 / jnp.sqrt(run_var + eps)
    scale = (gamma * inv_std).astype(jnp.float32)
    shift = (beta + gamma * inv_std * (bias - run_mean)).astype(jnp.float32)
    scale4 = jnp.tile(scale, 4).reshape(1, 4 * Cout)
    shift4 = jnp.tile(shift, 4).reshape(1, 4 * Cout)

    kernel = functools.partial(_up_conv_kernel, wp=Wp, th=TH, span=span)

    out_wide = pl.pallas_call(
        kernel,
        out_shape=jax.ShapeDtypeStruct((N, H * Wp, 4 * Cout), jnp.bfloat16),
        grid_spec=pltpu.PrefetchScalarGridSpec(
            num_scalar_prefetch=0,
            grid=(N, n_row_tiles),
            in_specs=[
                # whole padded image per n (index map constant in t -> DMA reused
                # across row tiles)
                pl.BlockSpec((1, S, Cin), lambda n, t: (n, 0, 0)),
                pl.BlockSpec((9 * Cin, 4 * Cout), lambda n, t: (0, 0)),
                pl.BlockSpec((1, 4 * Cout), lambda n, t: (0, 0)),
                pl.BlockSpec((1, 4 * Cout), lambda n, t: (0, 0)),
            ],
            out_specs=pl.BlockSpec((1, TH * Wp, 4 * Cout), lambda n, t: (n, t, 0)),
        ),
        compiler_params=pltpu.CompilerParams(
            # N is the megacore-parallel axis (avoids both cores holding the
            # full image on v7x); row tiles are a plain sequential axis.
            dimension_semantics=("parallel", "arbitrary"),
            vmem_limit_bytes=32 * 1024 * 1024,
        ),
    )(x_flat, w9, scale4, shift4)

    # --- single fused epilogue pass over the (bf16) wide frame: drop junk
    #     columns, de-interleave parities and go to NCHW f32.
    #     out[n, c, 2i+a, 2j+b] = wide[n, i*(W+2)+j, (2a+b)*Cout + c]
    out6 = out_wide.reshape(N, H, Wp, 2, 2, Cout)[:, :, :W]            # [n,i,j,a,b,c]
    out = jnp.transpose(out6, (0, 5, 1, 3, 2, 4)).reshape(N, Cout, 2 * H, 2 * W)
    return out.astype(jnp.float32)


def _reference_forward(x_nchw, weight, bias, gamma, beta, run_mean, run_var,
                       eps=1e-5):
    xu = jnp.repeat(jnp.repeat(x_nchw, 2, axis=2), 2, axis=3)
    y = jax.lax.conv_general_dilated(
        xu, weight, window_strides=(1, 1), padding=((1, 1), (1, 1)),
        dimension_numbers=("NCHW", "OIHW", "NCHW"),
        precision=jax.lax.Precision.HIGHEST)
    y = y + bias[None, :, None, None]
    inv_std = 1.0 / jnp.sqrt(run_var + eps)
    y = gamma[None, :, None, None] * (y - run_mean[None, :, None, None]) \
        * inv_std[None, :, None, None] + beta[None, :, None, None]
    return jnp.maximum(y, 0.0)


if __name__ == "__main__":
    key = jax.random.PRNGKey(0)
    N, Cin, Cout, H, W = 2, 4, 8, 16, 16

    k_x, k_w, k_b = jax.random.split(key, 3)
    x = jax.random.normal(k_x, (N, Cin, H, W), dtype=jnp.float32)

    # Conv2d params (deterministic synthetic init)
    fan_in = Cin * 3 * 3
    bound = 1.0 / (fan_in ** 0.5)
    weight = jax.random.uniform(k_w, (Cout, Cin, 3, 3), jnp.float32, -bound, bound)
    bias = jax.random.uniform(k_b, (Cout,), jnp.float32, -bound, bound)

    # BatchNorm2d params, default PyTorch init (inference-mode statistics)
    gamma = jnp.ones((Cout,), jnp.float32)
    beta = jnp.zeros((Cout,), jnp.float32)
    run_mean = jnp.zeros((Cout,), jnp.float32)
    run_var = jnp.ones((Cout,), jnp.float32)

    out = up_conv_forward(x, weight, bias, gamma, beta, run_mean, run_var)
    out = jax.block_until_ready(out)

    ref = _reference_forward(x, weight, bias, gamma, beta, run_mean, run_var)
    assert out.shape == (N, Cout, 2 * H, 2 * W), out.shape
    # bf16 MXU path + bf16 wide-frame store vs. f32 HIGHEST reference -> loosened tol.
    max_err = float(jnp.max(jnp.abs(out - ref)))
    assert jnp.allclose(out, ref, atol=4e-2, rtol=4e-2), f"max_err={max_err}"

    print("KERNEL_OK")
</pallas_src>

<mosaic_0001>
module attributes {stable_mosaic.version = 11 : i64} {
  func.func @_up_conv_kernel(%arg0: i32, %arg1: i32, %arg2: memref<1x328x4xbf16, #tpu.memory_space<vmem>>, %arg3: memref<36x32xbf16, #tpu.memory_space<vmem>>, %arg4: memref<1x32xf32, #tpu.memory_space<vmem>>, %arg5: memref<1x32xf32, #tpu.memory_space<vmem>>, %arg6: memref<1x144x32xbf16, #tpu.memory_space<vmem>>) attributes {dimension_semantics = [#tpu.dimension_semantics<parallel>, #tpu.dimension_semantics<arbitrary>], iteration_bounds = array<i64: 2, 2>, scalar_prefetch = 0 : i64, scratch_operands = 0 : i64, tpu.core_type = #tpu.core_type<tc>, window_params = [{transform_indices = @transform_0, window_bounds = array<i64: 1, 328, 4>}, {pipeline_mode = #tpu.pipeline_mode<synchronous>, transform_indices = @transform_1, window_bounds = array<i64: 36, 32>}, {pipeline_mode = #tpu.pipeline_mode<synchronous>, transform_indices = @transform_2, window_bounds = array<i64: 1, 32>}, {pipeline_mode = #tpu.pipeline_mode<synchronous>, transform_indices = @transform_3, window_bounds = array<i64: 1, 32>}, {transform_indices = @transform_4, window_bounds = array<i64: 1, 144, 32>}]} {
    %c144_i32 = arith.constant 144 : i32
    %0 = arith.muli %arg1, %c144_i32 : i32
    %1 = tpu.assume_multiple %0, 8 : i32
    %c0 = arith.constant 0 : index
    %2 = arith.index_cast %1 : i32 to index
    %c0_0 = arith.constant 0 : index
    %3 = vector.load %arg2[%c0, %2, %c0_0] : memref<1x328x4xbf16, #tpu.memory_space<vmem>>, vector<1x184x4xbf16>
    %4 = vector.shape_cast %3 : vector<1x184x4xbf16> to vector<184x4xbf16>
    %5 = vector.extract_strided_slice %4 {offsets = [0, 0], sizes = [144, 4], strides = [1, 1]} : vector<184x4xbf16> to vector<144x4xbf16>
    %6 = vector.extract_strided_slice %4 {offsets = [1, 0], sizes = [144, 4], strides = [1, 1]} : vector<184x4xbf16> to vector<144x4xbf16>
    %7 = vector.extract_strided_slice %4 {offsets = [2, 0], sizes = [144, 4], strides = [1, 1]} : vector<184x4xbf16> to vector<144x4xbf16>
    %8 = vector.extract_strided_slice %4 {offsets = [18, 0], sizes = [144, 4], strides = [1, 1]} : vector<184x4xbf16> to vector<144x4xbf16>
    %9 = vector.extract_strided_slice %4 {offsets = [19, 0], sizes = [144, 4], strides = [1, 1]} : vector<184x4xbf16> to vector<144x4xbf16>
    %10 = vector.extract_strided_slice %4 {offsets = [20, 0], sizes = [144, 4], strides = [1, 1]} : vector<184x4xbf16> to vector<144x4xbf16>
    %11 = vector.extract_strided_slice %4 {offsets = [36, 0], sizes = [144, 4], strides = [1, 1]} : vector<184x4xbf16> to vector<144x4xbf16>
    %12 = vector.extract_strided_slice %4 {offsets = [37, 0], sizes = [144, 4], strides = [1, 1]} : vector<184x4xbf16> to vector<144x4xbf16>
    %13 = vector.extract_strided_slice %4 {offsets = [38, 0], sizes = [144, 4], strides = [1, 1]} : vector<184x4xbf16> to vector<144x4xbf16>
    %14 = tpu.concatenate %5, %6, %7, %8, %9, %10, %11, %12, %13 in 1 : vector<144x4xbf16>, vector<144x4xbf16>, vector<144x4xbf16>, vector<144x4xbf16>, vector<144x4xbf16>, vector<144x4xbf16>, vector<144x4xbf16>, vector<144x4xbf16>, vector<144x4xbf16> -> vector<144x36xbf16>
    %c0_1 = arith.constant 0 : index
    %c0_2 = arith.constant 0 : index
    %15 = vector.load %arg3[%c0_1, %c0_2] : memref<36x32xbf16, #tpu.memory_space<vmem>>, vector<36x32xbf16>
    %cst = arith.constant dense<0.000000e+00> : vector<144x32xf32>
    %16 = tpu.matmul %14, %15, %cst {dimension_numbers = #tpu.dot_dimension_numbers<[1], [0], [0], [1], [0, 0, 1, 1], [], []>} : vector<144x36xbf16>, vector<36x32xbf16>, vector<144x32xf32> -> vector<144x32xf32>
    %c0_3 = arith.constant 0 : index
    %c0_4 = arith.constant 0 : index
    %17 = vector.load %arg4[%c0_3, %c0_4] : memref<1x32xf32, #tpu.memory_space<vmem>>, vector<1x32xf32>
    %18 = vector.shape_cast %17 : vector<1x32xf32> to vector<32xf32>
    %19 = vector.shape_cast %18 : vector<32xf32> to vector<1x32xf32>
    %20 = vector.broadcast %19 : vector<1x32xf32> to vector<144x32xf32>
    %21 = arith.mulf %16, %20 : vector<144x32xf32>
    %c0_5 = arith.constant 0 : index
    %c0_6 = arith.constant 0 : index
    %22 = vector.load %arg5[%c0_5, %c0_6] : memref<1x32xf32, #tpu.memory_space<vmem>>, vector<1x32xf32>
    %23 = vector.shape_cast %22 : vector<1x32xf32> to vector<32xf32>
    %24 = vector.shape_cast %23 : vector<32xf32> to vector<1x32xf32>
    %25 = vector.broadcast %24 : vector<1x32xf32> to vector<144x32xf32>
    %26 = arith.addf %21, %25 : vector<144x32xf32>
    %cst_7 = arith.constant 0.000000e+00 : f32
    %27 = vector.broadcast %cst_7 : f32 to vector<144x32xf32>
    %28 = arith.maximumf %26, %27 : vector<144x32xf32>
    %29 = arith.truncf %28 : vector<144x32xf32> to vector<144x32xbf16>
    %c0_8 = arith.constant 0 : index
    %c0_9 = arith.constant 0 : index
    %c0_10 = arith.constant 0 : index
    %30 = vector.load %arg6[%c0_8, %c0_9, %c0_10] : memref<1x144x32xbf16, #tpu.memory_space<vmem>>, vector<1x144x32xbf16>
    %31 = vector.shape_cast %30 : vector<1x144x32xbf16> to vector<144x32xbf16>
    %32 = vector.shape_cast %29 : vector<144x32xbf16> to vector<1x144x32xbf16>
    tpu.vector_store %arg6[%c0_8, %c0_9, %c0_10], %32 {strides = array<i32>} : memref<1x144x32xbf16, #tpu.memory_space<vmem>>, vector<1x144x32xbf16>,
    return
  }
  func.func @transform_0(%arg0: i32, %arg1: i32) -> (i32, i32, i32) {
    %c0_i32 = arith.constant 0 : i32
    %c0_i32_0 = arith.constant 0 : i32
    %c0_i32_1 = arith.constant 0 : i32
    return %arg0, %c0_i32, %c0_i32_0 : i32, i32, i32
  }
  func.func @transform_1(%arg0: i32, %arg1: i32) -> (i32, i32) {
    %c0_i32 = arith.constant 0 : i32
    %c0_i32_0 = arith.constant 0 : i32
    %c0_i32_1 = arith.constant 0 : i32
    return %c0_i32, %c0_i32_0 : i32, i32
  }
  func.func @transform_2(%arg0: i32, %arg1: i32) -> (i32, i32) {
    %c0_i32 = arith.constant 0 : i32
    %c0_i32_0 = arith.constant 0 : i32
    %c0_i32_1 = arith.constant 0 : i32
    return %c0_i32, %c0_i32_0 : i32, i32
  }
  func.func @transform_3(%arg0: i32, %arg1: i32) -> (i32, i32) {
    %c0_i32 = arith.constant 0 : i32
    %c0_i32_0 = arith.constant 0 : i32
    %c0_i32_1 = arith.constant 0 : i32
    return %c0_i32, %c0_i32_0 : i32, i32
  }
  func.func @transform_4(%arg0: i32, %arg1: i32) -> (i32, i32, i32) {
    %c0_i32 = arith.constant 0 : i32
    %c0_i32_0 = arith.constant 0 : i32
    return %arg0, %arg1, %c0_i32 : i32, i32, i32
  }
}

</mosaic_0001>

<llo_original>
// kernel: tile.18
$region0: #{tile.18}
  #allocation0 [shape = 's32[1]{0}', space=sflag, size = 0x4, scoped, tag = 'scoped memory for tile.18']
  %s0 = inlined_call_operand.vmem [shape: f32[8], index: 0, kind: input, shape index: {}]
  %s1 = inlined_call_operand.vmem [shape: f32[4,8], index: 1, kind: output, shape index: {}]
  // Predicated region
  $region2: #{tile.18} parent=0 // pred_check
    _
  $region3: #{tile.18} parent=0 // pred_check_branch
    %3 = sbr.rel (0) target = $region5
  $region4: #{tile.18} parent=0 // pred_region
    _
  $region5: #{tile.18} parent=0 // pred_fallthru
    _
  %v4 = vld [vmem:[%s0] ss:$0 sm:$0xff]
  %5 = vst [vmem:[%s1] sm:$0xf] %v4

// kernel: tile.19
$region0: #{tile.19}
  %s0 = inlined_call_operand.vmem [shape: f32[4,8], index: 0, kind: input, shape index: {}]
  %s1 = inlined_call_operand.vmem [shape: f32[1,32], index: 1, kind: output, shape index: {}]
  $region1: #{tile.19} parent=0
    #allocation0 [shape = 'u8[4096]{0}', space=vmem, size = 0x1000, scoped, tag = 'scoped mem for output reshape']
    #allocation1 [shape = 'u8[4096]{0}', space=vmem, size = 0x1000, scoped, tag = 'scoped mem for input reshape']
    %s3 = sshll.u32 1, 4
    %s4 = ssub.s32 %s3, 1
    %v5 = vld [vmem:[%s0] sm:%s4]
    %6 = vst [vmem:[#allocation1] sm:%s4] %v5
    %v7 = vld [vmem:[#allocation1] sm:$0x1]
    %vm8 = vcmask 64512
    %9 = vst.msk [vmem:[#allocation0] sm:$0x1] %vm8, %v7
    %s10 = scalar_lea.vmem [#allocation1], 3
    %v11 = vld [vmem:[%s10] sm:$0x1]
    %12 = vrot.lane.b32.xlu0 %v11, 24
    %v13 = vpop.permute.xlu0 %12
    %vm14 = vcmask 261312
    %15 = vst.msk [vmem:[#allocation0] sm:$0x1] %vm14, %v13
    %s16 = scalar_lea.vmem [#allocation1], 2
    %v17 = vld [vmem:[%s16] sm:$0x1]
    %18 = vrot.lane.b32.xlu0 %v17, 16
    %v19 = vpop.permute.xlu0 %18
    %vm20 = vcmask 195712
    %21 = vst.msk [vmem:[#allocation0] sm:$0x1] %vm20, %v19
    %s22 = scalar_lea.vmem [#allocation1], 1
    %v23 = vld [vmem:[%s22] sm:$0x1]
    %24 = vrot.lane.b32.xlu0 %v23, 8
    %v25 = vpop.permute.xlu0 %24
    %vm26 = vcmask 130112
    %27 = vst.msk [vmem:[#allocation0] sm:$0x1] %vm26, %v25
    %s29 = sshll.u32 1, 1
    %s30 = ssub.s32 %s29, 1
    %v32 = vld [vmem:[#allocation0] sm:%s30]
    %s33 = sshll.u32 1, 1
    %s34 = ssub.s32 %s33, 1
    %35 = vst [vmem:[%s1] sm:%s34] %v32

// kernel: up_conv_forward.1
$region0: #{up_conv_forward.1}
  #allocation0 [shape = 'u32[]', space=smem, size = 0x4, offset = 0x4, fixed_abs, tag = 'smem constant byte address 0x4 - core index']
  #allocation1 [shape = 'u32[144,128]{1,0:T(1,128)}', space=vmem, size = 0x12000, scoped, tag = 'internal scratch']
  %s0 = inlined_call_operand.vmem [shape: bf16[2,328,4], index: 0, kind: input, shape index: {}]
  %s1 = inlined_call_operand.vmem [shape: bf16[36,32], index: 1, kind: input, shape index: {}]
  %s2 = inlined_call_operand.vmem [shape: f32[1,32], index: 2, kind: input, shape index: {}]
  %s3 = inlined_call_operand.vmem [shape: f32[1,32], index: 3, kind: input, shape index: {}]
  %s4 = inlined_call_operand.vmem [shape: bf16[2,288,32], index: 4, kind: output, shape index: {}]
  %s5 = sld [smem:[#allocation0]]
  $region49: #{up_conv_forward.1} parent=0
    _
  %s7 = ssub.s32 1, %s5
  %s8 = scalar_select 0, %s7, %s5
  loop: start=0, step=1, limit=6
  $region2: #{up_conv_forward.1} parent=0 // loop_pre_header
    _
  $region3: #{up_conv_forward.1} parent=0 // loop_header
    %s10 = sphi 0, %s14
    %p11 = scmp.ge.s32.totalorder %s10, 6
    %s17 = sphi 0, %s29
    %s18 = sphi 0, %s25
    %s19 = sphi 0, %s17
    %s20 = sphi 0, %s18
    %s21 = sphi 0, %s19
    %s22 = sphi 0, %s20
    %s32 = sphi 0, %s34
    %s35 = sphi 0, %s32
    %s36 = sphi 0, %s35
    %s52 = sphi 0, %s36
    %s56 = sphi 0, %s56
    %s58 = sphi 0, %s56
    %s59 = sphi 0, %s58
    %s73 = sphi 0, %s59
    %s77 = sphi 0, %s77
    %s79 = sphi 0, %s77
    %s80 = sphi 0, %s79
    %s94 = sphi 0, %s80
    %s98 = sphi 0, %s98
    %s100 = sphi 0, %s98
    %s101 = sphi 0, %s100
    %s115 = sphi 0, %s101
    %s123 = sphi 0, %s125
    %s126 = sphi 0, %s123
    %s127 = sphi 0, %s126
    %s143 = sphi 0, %s127
  $region4: #{up_conv_forward.1} parent=0 // loop_header_branch
    %13 = sbr.rel (%p11) target = $region8
  $region5: #{up_conv_forward.1} parent=0 // loop_body
    %s15 = ssub.s32 %s10, 1
    %s16 = ssub.s32 %s10, 2
    %s23 = sadd.s32 1, %s18
    %p24 = scmp.ge.s32.totalorder %s23, 2
    %s25 = scalar_select %p24, 0, %s23
    %s26 = sadd.s32 1, %s17
    %s27 = scalar_select %p24, %s26, %s17
    %p28 = scmp.ge.s32.totalorder %s27, 2
    %s29 = scalar_select %p28, 0, %s27
    %s30 = ssub.s32 %s17, %s29
    %p31 = scmp.eq.s32.totalorder %s30, 0
    %s33 = sadd.s32 %s32, 1
    %s34 = scalar_select %p31, %s32, %s33
    %p37 = pneg %p31
    %p38 = scmp.eq.s32.totalorder %s10, 3
    %p39 = por %p37, %p38
    %p40 = scmp.ne.s32.totalorder %s32, %s35
    %p41 = scmp.eq.s32.totalorder %s10, 0
    %p42 = por %p40, %p41
    %p43 = scmp.ne.s32.totalorder %s32, %s35
    %p44 = scmp.eq.s32.totalorder %s15, 3
    %p45 = por %p43, %p44
    %p46 = scmp.ne.s32.totalorder %s35, %s36
    %p47 = scmp.eq.s32.totalorder %s15, 0
    %p48 = por %p46, %p47
    %p49 = scmp.ne.s32.totalorder %s35, %s36
    %p50 = scmp.eq.s32.totalorder %s16, 3
    %p51 = por %p49, %p50
    %p53 = scmp.ne.s32.totalorder %s36, %s52
    %p54 = scmp.eq.s32.totalorder %s16, 0
    %p55 = por %p53, %p54
    %s57 = sadd.s32 %s56, 1
    %p60 = scmp.eq.s32.totalorder %s10, 3
    %p61 = scmp.ne.s32.totalorder %s56, %s58
    %p62 = scmp.eq.s32.totalorder %s10, 0
    %p63 = por %p61, %p62
    %p64 = scmp.ne.s32.totalorder %s56, %s58
    %p65 = scmp.eq.s32.totalorder %s15, 3
    %p66 = por %p64, %p65
    %p67 = scmp.ne.s32.totalorder %s58, %s59
    %p68 = scmp.eq.s32.totalorder %s15, 0
    %p69 = por %p67, %p68
    %p70 = scmp.ne.s32.totalorder %s58, %s59
    %p71 = scmp.eq.s32.totalorder %s16, 3
    %p72 = por %p70, %p71
    %p74 = scmp.ne.s32.totalorder %s59, %s73
    %p75 = scmp.eq.s32.totalorder %s16, 0
    %p76 = por %p74, %p75
    %s78 = sadd.s32 %s77, 1
    %p81 = scmp.eq.s32.totalorder %s10, 3
    %p82 = scmp.ne.s32.totalorder %s77, %s79
    %p83 = scmp.eq.s32.totalorder %s10, 0
    %p84 = por %p82, %p83
    %p85 = scmp.ne.s32.totalorder %s77, %s79
    %p86 = scmp.eq.s32.totalorder %s15, 3
    %p87 = por %p85, %p86
    %p88 = scmp.ne.s32.totalorder %s79, %s80
    %p89 = scmp.eq.s32.totalorder %s15, 0
    %p90 = por %p88, %p89
    %p91 = scmp.ne.s32.totalorder %s79, %s80
    %p92 = scmp.eq.s32.totalorder %s16, 3
    %p93 = por %p91, %p92
    %p95 = scmp.ne.s32.totalorder %s80, %s94
    %p96 = scmp.eq.s32.totalorder %s16, 0
    %p97 = por %p95, %p96
    %s99 = sadd.s32 %s98, 1
    %p102 = scmp.eq.s32.totalorder %s10, 3
    %p103 = scmp.ne.s32.totalorder %s98, %s100
    %p104 = scmp.eq.s32.totalorder %s10, 0
    %p105 = por %p103, %p104
    %p106 = scmp.ne.s32.totalorder %s98, %s100
    %p107 = scmp.eq.s32.totalorder %s15, 3
    %p108 = por %p106, %p107
    %p109 = scmp.ne.s32.totalorder %s100, %s101
    %p110 = scmp.eq.s32.totalorder %s15, 0
    %p111 = por %p109, %p110
    %p112 = scmp.ne.s32.totalorder %s100, %s101
    %p113 = scmp.eq.s32.totalorder %s16, 3
    %p114 = por %p112, %p113
    %p116 = scmp.ne.s32.totalorder %s101, %s115
    %p117 = scmp.eq.s32.totalorder %s16, 0
    %p118 = por %p116, %p117
    %s119 = ssub.s32 %s17, %s29
    %s120 = ssub.s32 %s18, %s25
    %s121 = sor.u32 %s119, %s120
    %p122 = scmp.eq.s32.totalorder %s121, 0
    %s124 = sadd.s32 %s123, 1
    %s125 = scalar_select %p122, %s123, %s124
    %p128 = pneg %p122
    %p129 = scmp.eq.s32.totalorder %s10, 3
    %p130 = por %p128, %p129
    %p131 = scmp.ne.s32.totalorder %s123, %s126
    %p132 = scmp.eq.s32.totalorder %s10, 0
    %p133 = por %p131, %p132
    %p134 = scmp.ne.s32.totalorder %s123, %s126
    %p135 = scmp.eq.s32.totalorder %s15, 3
    %p136 = por %p134, %p135
    %p137 = scmp.ne.s32.totalorder %s126, %s127
    %p138 = scmp.eq.s32.totalorder %s15, 0
    %p139 = por %p137, %p138
    %p140 = scmp.ne.s32.totalorder %s126, %s127
    %p141 = scmp.eq.s32.totalorder %s16, 3
    %p142 = por %p140, %p141
    %p144 = scmp.ne.s32.totalorder %s127, %s143
    %p145 = scmp.eq.s32.totalorder %s16, 0
    %p146 = por %p144, %p145
    %p147 = scmp.le.s32.totalorder 1, %s10
    %p148 = scmp.lt.s32.totalorder %s10, 5
    %p149 = pnand %p147, %p148
    %p150 = pneg %p149
    // Predicated region
    $region9: #{up_conv_forward.1} parent=5 // pred_check
      _
    $region10: #{up_conv_forward.1} parent=5 // pred_check_branch
      %152 = sbr.rel (%p149) target = $region12
    $region11: #{up_conv_forward.1} parent=5 // pred_region
      %s153 = ssub.s32 %s10, 1
      // Predicated region
      $region13: #{up_conv_forward.1} parent=11 // pred_check
        %p154 = pneg %p69
      $region14: #{up_conv_forward.1} parent=11 // pred_check_branch
        %156 = sbr.rel (%p154) target = $region16
      $region15: #{up_conv_forward.1} parent=11 // pred_region
        _
      $region16: #{up_conv_forward.1} parent=11 // pred_fallthru
        _
      // Predicated region
      $region17: #{up_conv_forward.1} parent=11 // pred_check
        %p157 = pneg %p90
      $region18: #{up_conv_forward.1} parent=11 // pred_check_branch
        %159 = sbr.rel (%p157) target = $region20
      $region19: #{up_conv_forward.1} parent=11 // pred_region
        _
      $region20: #{up_conv_forward.1} parent=11 // pred_fallthru
        _
      // Predicated region
      $region21: #{up_conv_forward.1} parent=11 // pred_check
        %p160 = pneg %p111
      $region22: #{up_conv_forward.1} parent=11 // pred_check_branch
        %162 = sbr.rel (%p160) target = $region24
      $region23: #{up_conv_forward.1} parent=11 // pred_region
        _
      $region24: #{up_conv_forward.1} parent=11 // pred_fallthru
        _
    $region12: #{up_conv_forward.1} parent=5 // pred_fallthru
      _
    %p163 = scmp.lt.s32.totalorder %s10, 4
    // Predicated region
    $region25: #{up_conv_forward.1} parent=5 // pred_check
      %p164 = pneg %p163
    $region26: #{up_conv_forward.1} parent=5 // pred_check_branch
      %166 = sbr.rel (%p164) target = $region28
    $region27: #{up_conv_forward.1} parent=5 // pred_region
      // Predicated region
      $region29: #{up_conv_forward.1} parent=27 // pred_check
        %p167 = pneg %p42
      $region30: #{up_conv_forward.1} parent=27 // pred_check_branch
        %169 = sbr.rel (%p167) target = $region32
      $region31: #{up_conv_forward.1} parent=27 // pred_region
        %p170 = scmp.lt.s32.totalorder %s17, 1
        %s171 = scalar_select %p170, %s17, 1
        %s172 = smul.addr %s171, 41
        %s173 = smul.addr %s172, 4
        %s174 = scalar_lea.vmem %s0, %s173
      $region32: #{up_conv_forward.1} parent=27 // pred_fallthru
        _
    $region28: #{up_conv_forward.1} parent=5 // pred_fallthru
      _
    %p175 = scmp.le.s32.totalorder 1, %s10
    %p176 = scmp.lt.s32.totalorder %s10, 5
    %p177 = pnand %p175, %p176
    %p178 = pneg %p177
    // Predicated region
    $region33: #{up_conv_forward.1} parent=5 // pred_check
      _
    $region34: #{up_conv_forward.1} parent=5 // pred_check_branch
      %180 = sbr.rel (%p177) target = $region36
    $region35: #{up_conv_forward.1} parent=5 // pred_region
      %s181 = ssub.s32 %s10, 1
      %p182 = scmp.lt.s32.totalorder %s19, 1
      %s183 = scalar_select %p182, %s19, 1
      %s184 = smul.addr %s183, 41
      %s185 = smul.addr %s184, 4
      %s186 = scalar_lea.vmem %s0, %s185
      %p187 = pneg %p48
      %p188 = pneg %p45
      %p189 = pneg %p69
      %p190 = pneg %p66
      %p191 = pneg %p90
      %p192 = pneg %p87
      %p193 = pneg %p111
      %p194 = pneg %p108
      %p195 = pneg %p139
      %p196 = pneg %p136
      %s197 = smul.u32 18, %s20
      %p198 = scmp.lt.s32.totalorder %s19, 1
      %s199 = scalar_select %p198, %s19, 1
      %p200 = scmp.lt.s32.totalorder %s197, 35
      %s201 = scalar_select %p200, %s197, 35
      %s202 = smul.addr %s199, 36
      %s203 = sadd.s32 %s201, %s202
      %s204 = smul.addr %s203, 4
      %s205 = scalar_lea.vmem %s4, %s204
      %p206 = scmp.lt.s32.totalorder %s19, 1
      %s207 = scalar_select %p206, %s19, 1
      %s208 = smul.addr %s207, 41
      %s209 = smul.addr %s208, 4
      %s210 = scalar_lea.vmem %s0, %s209
      %s211 = smul.u32 18, %s20
      %p212 = scmp.lt.s32.totalorder %s19, 1
      %s213 = scalar_select %p212, %s19, 1
      %p214 = scmp.lt.s32.totalorder %s211, 35
      %s215 = scalar_select %p214, %s211, 35
      %s216 = smul.addr %s213, 36
      %s217 = sadd.s32 %s215, %s216
      %s218 = smul.addr %s217, 4
      %s219 = scalar_lea.vmem %s4, %s218
      %s220 = smul.u32 18, %s20
      %s222 = smul.u32 %s20, 144
      %s223 = sshra.s32 %s222, 3
      %s224 = sand.u32 %s222, 7
      %s225 = smul.addr %s223, 4
      %s226 = scalar_lea.vmem %s210, %s225
      %v227 = vld [vmem:[%s226] sm:$0xf]
      %v228 = vld [vmem:[%s226 + $0x4] sm:$0xf]
      %v229 = vld [vmem:[%s226 + $0x8] sm:$0xf]
      %v230 = vld [vmem:[%s226 + $0xc] sm:$0xf]
      %v231 = vld [vmem:[%s226 + $0x10] sm:$0xf]
      %v232 = vld [vmem:[%s226 + $0x14] sm:$0xf]
      %v233 = vld [vmem:[%s226 + $0x18] sm:$0xf]
      %v234 = vld [vmem:[%s226 + $0x1c] sm:$0xf]
      %v235 = vld [vmem:[%s226 + $0x20] sm:$0xf]
      %v236 = vld [vmem:[%s226 + $0x24] sm:$0xf]
      %v237 = vld [vmem:[%s226 + $0x28] sm:$0xf]
      %v238 = vld [vmem:[%s226 + $0x2c] sm:$0xf]
      %v239 = vld [vmem:[%s226 + $0x30] sm:$0xf]
      %v240 = vld [vmem:[%s226 + $0x34] sm:$0xf]
      %v241 = vld [vmem:[%s226 + $0x38] sm:$0xf]
      %v242 = vld [vmem:[%s226 + $0x3c] sm:$0xf]
      %v243 = vld [vmem:[%s226 + $0x40] sm:$0xf]
      %v244 = vld [vmem:[%s226 + $0x44] sm:$0xf]
      %v245 = vld [vmem:[%s226 + $0x48] sm:$0xf]
      %v246 = vld [vmem:[%s226 + $0x4c] sm:$0xf]
      %v247 = vld [vmem:[%s226 + $0x50] sm:$0xf]
      %v248 = vld [vmem:[%s226 + $0x54] sm:$0xf]
      %v249 = vld [vmem:[%s226 + $0x58] sm:$0xf]
      %v268 = vunpack.c.l.b16 %v227
      %v269 = vunpack.c.l.b16 %v228
      %v270 = vunpack.c.l.b16 %v229
      %v271 = vunpack.c.l.b16 %v230
      %v272 = vunpack.c.l.b16 %v231
      %v273 = vunpack.c.l.b16 %v232
      %v274 = vunpack.c.l.b16 %v233
      %v275 = vunpack.c.l.b16 %v234
      %v276 = vunpack.c.l.b16 %v235
      %v277 = vunpack.c.l.b16 %v236
      %v278 = vunpack.c.l.b16 %v237
      %v279 = vunpack.c.l.b16 %v238
      %v280 = vunpack.c.l.b16 %v239
      %v281 = vunpack.c.l.b16 %v240
      %v282 = vunpack.c.l.b16 %v241
      %v283 = vunpack.c.l.b16 %v242
      %v284 = vunpack.c.l.b16 %v243
      %v285 = vunpack.c.l.b16 %v244
      %v286 = vpack.c.b16 %v269, %v268
      %v287 = vpack.c.b16 %v271, %v270
      %v288 = vpack.c.b16 %v273, %v272
      %v289 = vpack.c.b16 %v275, %v274
      %v290 = vpack.c.b16 %v277, %v276
      %v291 = vpack.c.b16 %v279, %v278
      %v292 = vpack.c.b16 %v281, %v280
      %v293 = vpack.c.b16 %v283, %v282
      %v294 = vpack.c.b16 %v285, %v284
      %v296 = vunpack.c.l.b16 %v245
      %v297 = vpack.c.b16 %v296, %v296
      %vm298 = vsmask.f32 7424
      %v300 = vshrl.u32 %v286, 16
      %v302 = vshll.u32 %v286, 16
      %v304 = vrot.slane %v302, 1
      %v305 = vor.u32 %v300, %v304
      %v307 = vshll.u32 %v287, 16
      %v309 = vrot.slane %v307, 1
      %v310 = vsel %vm298, %v305, %v309
      %v311 = vshrl.u32 %v287, 16
      %v313 = vor.u32 %v311, %v309
      %v315 = vshll.u32 %v288, 16
      %v317 = vrot.slane %v315, 1
      %v318 = vsel %vm298, %v313, %v317
      %v319 = vshrl.u32 %v288, 16
      %v321 = vor.u32 %v319, %v317
      %v323 = vshll.u32 %v289, 16
      %v325 = vrot.slane %v323, 1
      %v326 = vsel %vm298, %v321, %v325
      %v327 = vshrl.u32 %v289, 16
      %v329 = vor.u32 %v327, %v325
      %v331 = vshll.u32 %v290, 16
      %v333 = vrot.slane %v331, 1
      %v334 = vsel %vm298, %v329, %v333
      %v335 = vshrl.u32 %v290, 16
      %v337 = vor.u32 %v335, %v333
      %v339 = vshll.u32 %v291, 16
      %v341 = vrot.slane %v339, 1
      %v342 = vsel %vm298, %v337, %v341
      %v343 = vshrl.u32 %v291, 16
      %v345 = vor.u32 %v343, %v341
      %v347 = vshll.u32 %v292, 16
      %v349 = vrot.slane %v347, 1
      %v350 = vsel %vm298, %v345, %v349
      %v351 = vshrl.u32 %v292, 16
      %v353 = vor.u32 %v351, %v349
      %v355 = vshll.u32 %v293, 16
      %v357 = vrot.slane %v355, 1
      %v358 = vsel %vm298, %v353, %v357
      %v359 = vshrl.u32 %v293, 16
      %v361 = vor.u32 %v359, %v357
      %v363 = vshll.u32 %v294, 16
      %v365 = vrot.slane %v363, 1
      %v366 = vsel %vm298, %v361, %v365
      %v367 = vshrl.u32 %v294, 16
      %v369 = vor.u32 %v367, %v365
      %v371 = vshll.u32 %v297, 16
      %v373 = vrot.slane %v371, 1
      %v374 = vsel %vm298, %v369, %v373
      %375 = vrot.lane.b32.xlu0 %v310, 4
      %v376 = vpop.permute.xlu0 %375
      %377 = vrot.lane.b32.xlu0 %v318, 4
      %v378 = vpop.permute.xlu0 %377
      %379 = vrot.lane.b32.xlu0 %v326, 4
      %v380 = vpop.permute.xlu0 %379
      %381 = vrot.lane.b32.xlu0 %v334, 4
      %v382 = vpop.permute.xlu0 %381
      %383 = vrot.lane.b32.xlu0 %v342, 4
      %v384 = vpop.permute.xlu0 %383
      %385 = vrot.lane.b32.xlu0 %v350, 4
      %v386 = vpop.permute.xlu0 %385
      %387 = vrot.lane.b32.xlu0 %v358, 4
      %v388 = vpop.permute.xlu0 %387
      %389 = vrot.lane.b32.xlu0 %v366, 4
      %v390 = vpop.permute.xlu0 %389
      %391 = vrot.lane.b32.xlu0 %v374, 4
      %v392 = vpop.permute.xlu0 %391
      %vm393 = vcmask 1046528
      %v394 = vrot.slane %v286, 1
      %v395 = vrot.slane %v287, 1
      %v396 = vsel %vm393, %v394, %v395
      %v397 = vrot.slane %v288, 1
      %v398 = vsel %vm393, %v395, %v397
      %v399 = vrot.slane %v289, 1
      %v400 = vsel %vm393, %v397, %v399
      %v401 = vrot.slane %v290, 1
      %v402 = vsel %vm393, %v399, %v401
      %v403 = vrot.slane %v291, 1
      %v404 = vsel %vm393, %v401, %v403
      %v405 = vrot.slane %v292, 1
      %v406 = vsel %vm393, %v403, %v405
      %v407 = vrot.slane %v293, 1
      %v408 = vsel %vm393, %v405, %v407
      %v409 = vrot.slane %v294, 1
      %v410 = vsel %vm393, %v407, %v409
      %v411 = vrot.slane %v297, 1
      %v412 = vsel %vm393, %v409, %v411
      %413 = vrot.lane.b32.xlu0 %v396, 8
      %v414 = vpop.permute.xlu0 %413
      %415 = vrot.lane.b32.xlu0 %v398, 8
      %v416 = vpop.permute.xlu0 %415
      %417 = vrot.lane.b32.xlu0 %v400, 8
      %v418 = vpop.permute.xlu0 %417
      %419 = vrot.lane.b32.xlu0 %v402, 8
      %v420 = vpop.permute.xlu0 %419
      %421 = vrot.lane.b32.xlu0 %v404, 8
      %v422 = vpop.permute.xlu0 %421
      %423 = vrot.lane.b32.xlu0 %v406, 8
      %v424 = vpop.permute.xlu0 %423
      %425 = vrot.lane.b32.xlu0 %v408, 8
      %v426 = vpop.permute.xlu0 %425
      %427 = vrot.lane.b32.xlu0 %v410, 8
      %v428 = vpop.permute.xlu0 %427
      %429 = vrot.lane.b32.xlu0 %v412, 8
      %v430 = vpop.permute.xlu0 %429
      %v433 = vunpack.c.l.b16 %v246
      %v434 = vunpack.c.l.b16 %v247
      %v435 = vpack.c.b16 %v433, %v296
      %v436 = vpack.c.b16 %v434, %v434
      %v437 = vrot.slane %v435, 1
      %v438 = vsel %vm393, %v409, %v437
      %v439 = vrot.slane %v436, 1
      %v440 = vsel %vm393, %v437, %v439
      %441 = vrot.lane.b32.xlu0 %v398, 12
      %v442 = vpop.permute.xlu0 %441
      %443 = vrot.lane.b32.xlu0 %v400, 12
      %v444 = vpop.permute.xlu0 %443
      %445 = vrot.lane.b32.xlu0 %v402, 12
      %v446 = vpop.permute.xlu0 %445
      %447 = vrot.lane.b32.xlu0 %v404, 12
      %v448 = vpop.permute.xlu0 %447
      %449 = vrot.lane.b32.xlu0 %v406, 12
      %v450 = vpop.permute.xlu0 %449
      %451 = vrot.lane.b32.xlu0 %v408, 12
      %v452 = vpop.permute.xlu0 %451
      %453 = vrot.lane.b32.xlu0 %v410, 12
      %v454 = vpop.permute.xlu0 %453
      %455 = vrot.lane.b32.xlu0 %v438, 12
      %v456 = vpop.permute.xlu0 %455
      %457 = vrot.lane.b32.xlu0 %v440, 12
      %v458 = vpop.permute.xlu0 %457
      %vm459 = vsmask.f32 6400
      %v460 = vrot.slane %v311, 1
      %v461 = vrot.slane %v307, 2
      %v462 = vor.u32 %v460, %v461
      %v463 = vrot.slane %v319, 1
      %v464 = vrot.slane %v315, 2
      %v465 = vor.u32 %v463, %v464
      %v466 = vsel %vm459, %v462, %v465
      %v467 = vrot.slane %v327, 1
      %v468 = vrot.slane %v323, 2
      %v469 = vor.u32 %v467, %v468
      %v470 = vsel %vm459, %v465, %v469
      %v471 = vrot.slane %v335, 1
      %v472 = vrot.slane %v331, 2
      %v473 = vor.u32 %v471, %v472
      %v474 = vsel %vm459, %v469, %v473
      %v475 = vrot.slane %v343, 1
      %v476 = vrot.slane %v339, 2
      %v477 = vor.u32 %v475, %v476
      %v478 = vsel %vm459, %v473, %v477
      %v479 = vrot.slane %v351, 1
      %v480 = vrot.slane %v347, 2
      %v481 = vor.u32 %v479, %v480
      %v482 = vsel %vm459, %v477, %v481
      %v483 = vrot.slane %v359, 1
      %v484 = vrot.slane %v355, 2
      %v485 = vor.u32 %v483, %v484
      %v486 = vsel %vm459, %v481, %v485
      %v487 = vrot.slane %v367, 1
      %v488 = vrot.slane %v363, 2
      %v489 = vor.u32 %v487, %v488
      %v490 = vsel %vm459, %v485, %v489
      %v492 = vshrl.u32 %v435, 16
      %v494 = vrot.slane %v492, 1
      %v495 = vshll.u32 %v435, 16
      %v497 = vrot.slane %v495, 2
      %v498 = vor.u32 %v494, %v497
      %v499 = vsel %vm459, %v489, %v498
      %v501 = vshrl.u32 %v436, 16
      %v503 = vrot.slane %v501, 1
      %v504 = vshll.u32 %v436, 16
      %v506 = vrot.slane %v504, 2
      %v507 = vor.u32 %v503, %v506
      %v508 = vsel %vm459, %v498, %v507
      %509 = vrot.lane.b32.xlu0 %v466, 16
      %v510 = vpop.permute.xlu0 %509
      %511 = vrot.lane.b32.xlu0 %v470, 16
      %v512 = vpop.permute.xlu0 %511
      %513 = vrot.lane.b32.xlu0 %v474, 16
      %v514 = vpop.permute.xlu0 %513
      %515 = vrot.lane.b32.xlu0 %v478, 16
      %v516 = vpop.permute.xlu0 %515
      %517 = vrot.lane.b32.xlu0 %v482, 16
      %v518 = vpop.permute.xlu0 %517
      %519 = vrot.lane.b32.xlu0 %v486, 16
      %v520 = vpop.permute.xlu0 %519
      %521 = vrot.lane.b32.xlu0 %v490, 16
      %v522 = vpop.permute.xlu0 %521
      %523 = vrot.lane.b32.xlu0 %v499, 16
      %v524 = vpop.permute.xlu0 %523
      %525 = vrot.lane.b32.xlu0 %v508, 16
      %v526 = vpop.permute.xlu0 %525
      %vm527 = vcmask 1045504
      %v528 = vrot.slane %v287, 2
      %v529 = vrot.slane %v288, 2
      %v530 = vsel %vm527, %v528, %v529
      %v531 = vrot.slane %v289, 2
      %v532 = vsel %vm527, %v529, %v531
      %v533 = vrot.slane %v290, 2
      %v534 = vsel %vm527, %v531, %v533
      %v535 = vrot.slane %v291, 2
      %v536 = vsel %vm527, %v533, %v535
      %v537 = vrot.slane %v292, 2
      %v538 = vsel %vm527, %v535, %v537
      %v539 = vrot.slane %v293, 2
      %v540 = vsel %vm527, %v537, %v539
      %v541 = vrot.slane %v294, 2
      %v542 = vsel %vm527, %v539, %v541
      %v543 = vrot.slane %v435, 2
      %v544 = vsel %vm527, %v541, %v543
      %v545 = vrot.slane %v436, 2
      %v546 = vsel %vm527, %v543, %v545
      %547 = vrot.lane.b32.xlu0 %v530, 20
      %v548 = vpop.permute.xlu0 %547
      %549 = vrot.lane.b32.xlu0 %v532, 20
      %v550 = vpop.permute.xlu0 %549
      %551 = vrot.lane.b32.xlu0 %v534, 20
      %v552 = vpop.permute.xlu0 %551
      %553 = vrot.lane.b32.xlu0 %v536, 20
      %v554 = vpop.permute.xlu0 %553
      %555 = vrot.lane.b32.xlu0 %v538, 20
      %v556 = vpop.permute.xlu0 %555
      %557 = vrot.lane.b32.xlu0 %v540, 20
      %v558 = vpop.permute.xlu0 %557
      %559 = vrot.lane.b32.xlu0 %v542, 20
      %v560 = vpop.permute.xlu0 %559
      %561 = vrot.lane.b32.xlu0 %v544, 20
      %v562 = vpop.permute.xlu0 %561
      %563 = vrot.lane.b32.xlu0 %v546, 20
      %v564 = vpop.permute.xlu0 %563
      %v567 = vunpack.c.l.b16 %v248
      %v568 = vunpack.c.l.b16 %v249
      %v569 = vpack.c.b16 %v567, %v434
      %v570 = vpack.c.b16 %v568, %v568
      %v571 = vrot.slane %v569, 2
      %v572 = vsel %vm527, %v543, %v571
      %v573 = vrot.slane %v570, 2
      %v574 = vsel %vm527, %v571, %v573
      %575 = vrot.lane.b32.xlu0 %v532, 24
      %v576 = vpop.permute.xlu0 %575
      %577 = vrot.lane.b32.xlu0 %v534, 24
      %v578 = vpop.permute.xlu0 %577
      %579 = vrot.lane.b32.xlu0 %v536, 24
      %v580 = vpop.permute.xlu0 %579
      %581 = vrot.lane.b32.xlu0 %v538, 24
      %v582 = vpop.permute.xlu0 %581
      %583 = vrot.lane.b32.xlu0 %v540, 24
      %v584 = vpop.permute.xlu0 %583
      %585 = vrot.lane.b32.xlu0 %v542, 24
      %v586 = vpop.permute.xlu0 %585
      %587 = vrot.lane.b32.xlu0 %v544, 24
      %v588 = vpop.permute.xlu0 %587
      %589 = vrot.lane.b32.xlu0 %v572, 24
      %v590 = vpop.permute.xlu0 %589
      %591 = vrot.lane.b32.xlu0 %v574, 24
      %v592 = vpop.permute.xlu0 %591
      %vm593 = vsmask.f32 5376
      %v594 = vrot.slane %v319, 2
      %v595 = vrot.slane %v315, 3
      %v596 = vor.u32 %v594, %v595
      %v597 = vrot.slane %v327, 2
      %v598 = vrot.slane %v323, 3
      %v599 = vor.u32 %v597, %v598
      %v600 = vsel %vm593, %v596, %v599
      %v601 = vrot.slane %v335, 2
      %v602 = vrot.slane %v331, 3
      %v603 = vor.u32 %v601, %v602
      %v604 = vsel %vm593, %v599, %v603
      %v605 = vrot.slane %v343, 2
      %v606 = vrot.slane %v339, 3
      %v607 = vor.u32 %v605, %v606
      %v608 = vsel %vm593, %v603, %v607
      %v609 = vrot.slane %v351, 2
      %v610 = vrot.slane %v347, 3
      %v611 = vor.u32 %v609, %v610
      %v612 = vsel %vm593, %v607, %v611
      %v613 = vrot.slane %v359, 2
      %v614 = vrot.slane %v355, 3
      %v615 = vor.u32 %v613, %v614
      %v616 = vsel %vm593, %v611, %v615
      %v617 = vrot.slane %v367, 2
      %v618 = vrot.slane %v363, 3
      %v619 = vor.u32 %v617, %v618
      %v620 = vsel %vm593, %v615, %v619
      %v621 = vrot.slane %v492, 2
      %v622 = vrot.slane %v495, 3
      %v623 = vor.u32 %v621, %v622
      %v624 = vsel %vm593, %v619, %v623
      %v626 = vshrl.u32 %v569, 16
      %v628 = vrot.slane %v626, 2
      %v629 = vshll.u32 %v569, 16
      %v631 = vrot.slane %v629, 3
      %v632 = vor.u32 %v628, %v631
      %v633 = vsel %vm593, %v623, %v632
      %v635 = vshrl.u32 %v570, 16
      %v637 = vrot.slane %v635, 2
      %v638 = vshll.u32 %v570, 16
      %v640 = vrot.slane %v638, 3
      %v641 = vor.u32 %v637, %v640
      %v642 = vsel %vm593, %v632, %v641
      %643 = vrot.lane.b32.xlu0 %v600, 28
      %v644 = vpop.permute.xlu0 %643
      %645 = vrot.lane.b32.xlu0 %v604, 28
      %v646 = vpop.permute.xlu0 %645
      %647 = vrot.lane.b32.xlu0 %v608, 28
      %v648 = vpop.permute.xlu0 %647
      %649 = vrot.lane.b32.xlu0 %v612, 28
      %v650 = vpop.permute.xlu0 %649
      %651 = vrot.lane.b32.xlu0 %v616, 28
      %v652 = vpop.permute.xlu0 %651
      %653 = vrot.lane.b32.xlu0 %v620, 28
      %v654 = vpop.permute.xlu0 %653
      %655 = vrot.lane.b32.xlu0 %v624, 28
      %v656 = vpop.permute.xlu0 %655
      %657 = vrot.lane.b32.xlu0 %v633, 28
      %v658 = vpop.permute.xlu0 %657
      %659 = vrot.lane.b32.xlu0 %v642, 28
      %v660 = vpop.permute.xlu0 %659
      %vm661 = vcmask 1044480
      %v662 = vrot.slane %v288, 3
      %v663 = vrot.slane %v289, 3
      %v664 = vsel %vm661, %v662, %v663
      %v665 = vrot.slane %v290, 3
      %v666 = vsel %vm661, %v663, %v665
      %v667 = vrot.slane %v291, 3
      %v668 = vsel %vm661, %v665, %v667
      %v669 = vrot.slane %v292, 3
      %v670 = vsel %vm661, %v667, %v669
      %v671 = vrot.slane %v293, 3
      %v672 = vsel %vm661, %v669, %v671
      %v673 = vrot.slane %v294, 3
      %v674 = vsel %vm661, %v671, %v673
      %v675 = vrot.slane %v435, 3
      %v676 = vsel %vm661, %v673, %v675
      %v677 = vrot.slane %v569, 3
      %v678 = vsel %vm661, %v675, %v677
      %v679 = vrot.slane %v570, 3
      %v680 = vsel %vm661, %v677, %v679
      %681 = vrot.lane.b32.xlu0 %v664, 32
      %v682 = vpop.permute.xlu0 %681
      %683 = vrot.lane.b32.xlu0 %v666, 32
      %v684 = vpop.permute.xlu0 %683
      %685 = vrot.lane.b32.xlu0 %v668, 32
      %v686 = vpop.permute.xlu0 %685
      %687 = vrot.lane.b32.xlu0 %v670, 32
      %v688 = vpop.permute.xlu0 %687
      %689 = vrot.lane.b32.xlu0 %v672, 32
      %v690 = vpop.permute.xlu0 %689
      %691 = vrot.lane.b32.xlu0 %v674, 32
      %v692 = vpop.permute.xlu0 %691
      %693 = vrot.lane.b32.xlu0 %v676, 32
      %v694 = vpop.permute.xlu0 %693
      %695 = vrot.lane.b32.xlu0 %v678, 32
      %v696 = vpop.permute.xlu0 %695
      %697 = vrot.lane.b32.xlu0 %v680, 32
      %v698 = vpop.permute.xlu0 %697
      %vm699 = vcmask 31744
      %v701 = vsel %vm699, %v286, %v376
      %v703 = vsel %vm699, %v287, %v378
      %v705 = vsel %vm699, %v288, %v380
      %v707 = vsel %vm699, %v289, %v382
      %v709 = vsel %vm699, %v290, %v384
      %v711 = vsel %vm699, %v291, %v386
      %v713 = vsel %vm699, %v292, %v388
      %v715 = vsel %vm699, %v293, %v390
      %v717 = vsel %vm699, %v294, %v392
      %vm718 = vcmask 64512
      %v720 = vsel %vm718, %v701, %v414
      %v722 = vsel %vm718, %v703, %v416
      %v724 = vsel %vm718, %v705, %v418
      %v726 = vsel %vm718, %v707, %v420
      %v728 = vsel %vm718, %v709, %v422
      %v730 = vsel %vm718, %v711, %v424
      %v732 = vsel %vm718, %v713, %v426
      %v734 = vsel %vm718, %v715, %v428
      %v736 = vsel %vm718, %v717, %v430
      %vm737 = vcmask 97280
      %v739 = vsel %vm737, %v720, %v442
      %v741 = vsel %vm737, %v722, %v444
      %v743 = vsel %vm737, %v724, %v446
      %v745 = vsel %vm737, %v726, %v448
      %v747 = vsel %vm737, %v728, %v450
      %v749 = vsel %vm737, %v730, %v452
      %v751 = vsel %vm737, %v732, %v454
      %v753 = vsel %vm737, %v734, %v456
      %v755 = vsel %vm737, %v736, %v458
      %vm756 = vcmask 130048
      %v758 = vsel %vm756, %v739, %v510
      %v760 = vsel %vm756, %v741, %v512
      %v762 = vsel %vm756, %v743, %v514
      %v764 = vsel %vm756, %v745, %v516
      %v766 = vsel %vm756, %v747, %v518
      %v768 = vsel %vm756, %v749, %v520
      %v770 = vsel %vm756, %v751, %v522
      %v772 = vsel %vm756, %v753, %v524
      %v774 = vsel %vm756, %v755, %v526
      %vm775 = vcmask 162816
      %v777 = vsel %vm775, %v758, %v548
      %v779 = vsel %vm775, %v760, %v550
      %v781 = vsel %vm775, %v762, %v552
      %v783 = vsel %vm775, %v764, %v554
      %v785 = vsel %vm775, %v766, %v556
      %v787 = vsel %vm775, %v768, %v558
      %v789 = vsel %vm775, %v770, %v560
      %v791 = vsel %vm775, %v772, %v562
      %v793 = vsel %vm775, %v774, %v564
      %vm794 = vcmask 195584
      %v796 = vsel %vm794, %v777, %v576
      %v798 = vsel %vm794, %v779, %v578
      %v800 = vsel %vm794, %v781, %v580
      %v802 = vsel %vm794, %v783, %v582
      %v804 = vsel %vm794, %v785, %v584
      %v806 = vsel %vm794, %v787, %v586
      %v808 = vsel %vm794, %v789, %v588
      %v810 = vsel %vm794, %v791, %v590
      %v812 = vsel %vm794, %v793, %v592
      %vm813 = vcmask 228352
      %v815 = vsel %vm813, %v796, %v644
      %v817 = vsel %vm813, %v798, %v646
      %v819 = vsel %vm813, %v800, %v648
      %v821 = vsel %vm813, %v802, %v650
      %v823 = vsel %vm813, %v804, %v652
      %v825 = vsel %vm813, %v806, %v654
      %v827 = vsel %vm813, %v808, %v656
      %v829 = vsel %vm813, %v810, %v658
      %v831 = vsel %vm813, %v812, %v660
      %vm832 = vcmask 261120
      %v834 = vsel %vm832, %v815, %v682
      %v836 = vsel %vm832, %v817, %v684
      %v838 = vsel %vm832, %v819, %v686
      %v840 = vsel %vm832, %v821, %v688
      %v842 = vsel %vm832, %v823, %v690
      %v844 = vsel %vm832, %v825, %v692
      %v846 = vsel %vm832, %v827, %v694
      %v848 = vsel %vm832, %v829, %v696
      %v850 = vsel %vm832, %v831, %v698
      %v851 = vld [vmem:[%s1] sm:$0xf]
      %v852 = vld [vmem:[%s1 + $0x4] sm:$0xf]
      %v853 = vld [vmem:[%s1 + $0x8] sm:$0xf]
      %v854 = vld [vmem:[%s1 + $0xc] sm:$0xf]
      %v855 = vld [vmem:[%s1 + $0x10] sm:$0x3]
      %v861 = vunpack.c.l.b16 %v851
      %v862 = vunpack.c.l.b16 %v852
      %v863 = vunpack.c.l.b16 %v853
      %v864 = vunpack.c.l.b16 %v854
      %v865 = vunpack.c.l.b16 %v855
      %v866 = vpack.c.b16 %v862, %v861
      %v867 = vpack.c.b16 %v864, %v863
      %v868 = vpack.c.b16 %v865, %v865
      %vm871 = vcmask 293888
      %v872 = vsel %vm871, %v834, 0
      %v874 = vsel %vm871, %v836, 0
      %v876 = vsel %vm871, %v838, 0
      %v878 = vsel %vm871, %v840, 0
      %v880 = vsel %vm871, %v842, 0
      %v882 = vsel %vm871, %v844, 0
      %v884 = vsel %vm871, %v846, 0
      %v886 = vsel %vm871, %v848, 0
      %v888 = vsel %vm871, %v850, 0
      %vm890 = vcmask 1041408
      %v892 = vsel %vm890, %v868, 0
      %894 = vmatprep.subr.bf16.mxu0 0
      %895 = vmatpush1.bf16.msra.mxu0 0
      %896 = vmatprep.subr.bf16.mxu0 0
      %897 = vmatpush1.bf16.msra.mxu0 0
      %898 = vmatprep.subr.bf16.mxu0 0
      %899 = vmatpush1.bf16.msra.mxu0 0
      %900 = vmatprep.subr.bf16.mxu0 0
      %901 = vmatpush1.bf16.msra.mxu0 0
      %902 = vmatprep.subr.bf16.mxu0 0
      %903 = vmatpush1.bf16.msra.mxu0 0
      %904 = vmatprep.subr.bf16.mxu0 0
      %905 = vmatpush1.bf16.msra.mxu0 %v892
      %906 = vmatprep.subr.bf16.mxu0 0
      %907 = vmatpush1.bf16.msra.mxu0 %v867
      %908 = vmatprep.subr.bf16.mxu0 0
      %909 = vmatpush1.bf16.msra.mxu0 %v866
      %910 = vmatprep.subr.bf16.mxu0 0
      %911 = vmatpush2.bf16.msra.mxu0 0
      %912 = vmatprep.subr.bf16.mxu0 0
      %913 = vmatpush2.bf16.msra.mxu0 0
      %914 = vmatprep.subr.bf16.mxu0 0
      %915 = vmatpush2.bf16.msra.mxu0 0
      %916 = vmatprep.subr.bf16.mxu0 0
      %917 = vmatpush2.bf16.msra.mxu0 0
      %918 = vmatprep.subr.bf16.mxu0 0
      %919 = vmatpush2.bf16.msra.mxu0 0
      %920 = vmatprep.subr.bf16.mxu0 0
      %921 = vmatpush2.bf16.msra.mxu0 0
      %922 = vmatprep.subr.bf16.mxu0 0
      %923 = vmatpush2.bf16.msra.mxu0 0
      %924 = vmatprep.subr.bf16.mxu0 0
      %925 = vmatpush2.bf16.msra.mxu0 0
      %926 = vmatprep.mubr.bf16.mxu0 0
      %927 = vmatmul.mubr.bf16.gmra.mxu0 %v872
      %v928 = vpop.f32.mrf.mxu0
      %v929 = vadd.f32 0.0, %v928
      %v930 = vpop.f32.mrf.mxu0
      %v931 = vpop.f32.mrf.mxu0
      %v932 = vadd.f32 0.0, %v931
      %v933 = vpop.f32.mrf.mxu0
      %934 = vmatprep.mubr.bf16.mxu0 0
      %935 = vmatmul.mubr.bf16.gmra.mxu0 %v874
      %v936 = vpop.f32.mrf.mxu0
      %v937 = vadd.f32 0.0, %v936
      %v938 = vpop.f32.mrf.mxu0
      %v939 = vpop.f32.mrf.mxu0
      %v940 = vadd.f32 0.0, %v939
      %v941 = vpop.f32.mrf.mxu0
      %942 = vmatprep.mubr.bf16.mxu0 0
      %943 = vmatmul.mubr.bf16.gmra.mxu0 %v876
      %v944 = vpop.f32.mrf.mxu0
      %v945 = vadd.f32 0.0, %v944
      %v946 = vpop.f32.mrf.mxu0
      %v947 = vpop.f32.mrf.mxu0
      %v948 = vadd.f32 0.0, %v947
      %v949 = vpop.f32.mrf.mxu0
      %950 = vmatprep.mubr.bf16.mxu0 0
      %951 = vmatmul.mubr.bf16.gmra.mxu0 %v878
      %v952 = vpop.f32.mrf.mxu0
      %v953 = vadd.f32 0.0, %v952
      %v954 = vpop.f32.mrf.mxu0
      %v955 = vpop.f32.mrf.mxu0
      %v956 = vadd.f32 0.0, %v955
      %v957 = vpop.f32.mrf.mxu0
      %958 = vmatprep.mubr.bf16.mxu0 0
      %959 = vmatmul.mubr.bf16.gmra.mxu0 %v880
      %v960 = vpop.f32.mrf.mxu0
      %v961 = vadd.f32 0.0, %v960
      %v962 = vpop.f32.mrf.mxu0
      %v963 = vpop.f32.mrf.mxu0
      %v964 = vadd.f32 0.0, %v963
      %v965 = vpop.f32.mrf.mxu0
      %966 = vmatprep.mubr.bf16.mxu0 0
      %967 = vmatmul.mubr.bf16.gmra.mxu0 %v882
      %v968 = vpop.f32.mrf.mxu0
      %v969 = vadd.f32 0.0, %v968
      %v970 = vpop.f32.mrf.mxu0
      %v971 = vpop.f32.mrf.mxu0
      %v972 = vadd.f32 0.0, %v971
      %v973 = vpop.f32.mrf.mxu0
      %974 = vmatprep.mubr.bf16.mxu0 0
      %975 = vmatmul.mubr.bf16.gmra.mxu0 %v884
      %v976 = vpop.f32.mrf.mxu0
      %v977 = vadd.f32 0.0, %v976
      %v978 = vpop.f32.mrf.mxu0
      %v979 = vpop.f32.mrf.mxu0
      %v980 = vadd.f32 0.0, %v979
      %v981 = vpop.f32.mrf.mxu0
      %982 = vmatprep.mubr.bf16.mxu0 0
      %983 = vmatmul.mubr.bf16.gmra.mxu0 %v886
      %v984 = vpop.f32.mrf.mxu0
      %v985 = vadd.f32 0.0, %v984
      %v986 = vpop.f32.mrf.mxu0
      %v987 = vpop.f32.mrf.mxu0
      %v988 = vadd.f32 0.0, %v987
      %v989 = vpop.f32.mrf.mxu0
      %990 = vmatprep.mubr.bf16.mxu0 0
      %991 = vmatmul.mubr.bf16.gmra.mxu0 %v888
      %v992 = vpop.f32.mrf.mxu0
      %v993 = vadd.f32 0.0, %v992
      %v994 = vpop.f32.mrf.mxu0
      %v995 = vpop.f32.mrf.mxu0
      %v996 = vadd.f32 0.0, %v995
      %v997 = vpop.f32.mrf.mxu0
      %998 = vdwg.mxu0
      %v999 = vld [vmem:[%s2] sm:$0x1]
      %v1001 = vlaneseq
      %v1002 = vshrl.u32 %v1001, 7
      %v1003 = vsub.s32 0, %v1002
      %v1004 = vrot.slane %v999, %v1003
      %v1006 = vmul.f32 %v929, %v1004
      %v1007 = vmul.f32 %v932, %v1004
      %v1008 = vmul.f32 %v937, %v1004
      %v1009 = vmul.f32 %v940, %v1004
      %v1010 = vmul.f32 %v945, %v1004
      %v1011 = vmul.f32 %v948, %v1004
      %v1012 = vmul.f32 %v953, %v1004
      %v1013 = vmul.f32 %v956, %v1004
      %v1014 = vmul.f32 %v961, %v1004
      %v1015 = vmul.f32 %v964, %v1004
      %v1016 = vmul.f32 %v969, %v1004
      %v1017 = vmul.f32 %v972, %v1004
      %v1018 = vmul.f32 %v977, %v1004
      %v1019 = vmul.f32 %v980, %v1004
      %v1020 = vmul.f32 %v985, %v1004
      %v1021 = vmul.f32 %v988, %v1004
      %v1022 = vmul.f32 %v993, %v1004
      %v1023 = vmul.f32 %v996, %v1004
      %v1024 = vld [vmem:[%s3] sm:$0x1]
      %v1026 = vlaneseq
      %v1027 = vshrl.u32 %v1026, 7
      %v1028 = vsub.s32 0, %v1027
      %v1029 = vrot.slane %v1024, %v1028
      %v1031 = vadd.f32 %v1006, %v1029
      %v1032 = vadd.f32 %v1007, %v1029
      %v1033 = vadd.f32 %v1008, %v1029
      %v1034 = vadd.f32 %v1009, %v1029
      %v1035 = vadd.f32 %v1010, %v1029
      %v1036 = vadd.f32 %v1011, %v1029
      %v1037 = vadd.f32 %v1012, %v1029
      %v1038 = vadd.f32 %v1013, %v1029
      %v1039 = vadd.f32 %v1014, %v1029
      %v1040 = vadd.f32 %v1015, %v1029
      %v1041 = vadd.f32 %v1016, %v1029
      %v1042 = vadd.f32 %v1017, %v1029
      %v1043 = vadd.f32 %v1018, %v1029
      %v1044 = vadd.f32 %v1019, %v1029
      %v1045 = vadd.f32 %v1020, %v1029
      %v1046 = vadd.f32 %v1021, %v1029
      %v1047 = vadd.f32 %v1022, %v1029
      %v1048 = vadd.f32 %v1023, %v1029
      %v1049 = vmax.f32 %v1031, 0.0
      %v1050 = vmax.f32 %v1032, 0.0
      %v1051 = vmax.f32 %v1033, 0.0
      %v1052 = vmax.f32 %v1034, 0.0
      %v1053 = vmax.f32 %v1035, 0.0
      %v1054 = vmax.f32 %v1036, 0.0
      %v1055 = vmax.f32 %v1037, 0.0
      %v1056 = vmax.f32 %v1038, 0.0
      %v1057 = vmax.f32 %v1039, 0.0
      %v1058 = vmax.f32 %v1040, 0.0
      %v1059 = vmax.f32 %v1041, 0.0
      %v1060 = vmax.f32 %v1042, 0.0
      %v1061 = vmax.f32 %v1043, 0.0
      %v1062 = vmax.f32 %v1044, 0.0
      %v1063 = vmax.f32 %v1045, 0.0
      %v1064 = vmax.f32 %v1046, 0.0
      %v1065 = vmax.f32 %v1047, 0.0
      %v1066 = vmax.f32 %v1048, 0.0
      %v1067 = vpack.c.bf16 %v1050, %v1049
      %v1068 = vpack.c.bf16 %v1052, %v1051
      %v1069 = vpack.c.bf16 %v1054, %v1053
      %v1070 = vpack.c.bf16 %v1056, %v1055
      %v1071 = vpack.c.bf16 %v1058, %v1057
      %v1072 = vpack.c.bf16 %v1060, %v1059
      %v1073 = vpack.c.bf16 %v1062, %v1061
      %v1074 = vpack.c.bf16 %v1064, %v1063
      %v1075 = vpack.c.bf16 %v1066, %v1065
      %v1085 = vunpack.c.l.b16 %v1067
      %v1086 = vunpack.c.h.b16 %v1067
      %v1087 = vunpack.c.l.b16 %v1068
      %v1088 = vunpack.c.h.b16 %v1068
      %v1089 = vunpack.c.l.b16 %v1069
      %v1090 = vunpack.c.h.b16 %v1069
      %v1091 = vunpack.c.l.b16 %v1070
      %v1092 = vunpack.c.h.b16 %v1070
      %v1093 = vunpack.c.l.b16 %v1071
      %v1094 = vunpack.c.h.b16 %v1071
      %v1095 = vunpack.c.l.b16 %v1072
      %v1096 = vunpack.c.h.b16 %v1072
      %v1097 = vunpack.c.l.b16 %v1073
      %v1098 = vunpack.c.h.b16 %v1073
      %v1099 = vunpack.c.l.b16 %v1074
      %v1100 = vunpack.c.h.b16 %v1074
      %v1101 = vunpack.c.l.b16 %v1075
      %v1102 = vunpack.c.h.b16 %v1075
      %v1103 = vpack.c.b16 %v1085, %v1085
      %v1104 = vpack.c.b16 %v1086, %v1086
      %v1105 = vpack.c.b16 %v1087, %v1087
      %v1106 = vpack.c.b16 %v1088, %v1088
      %v1107 = vpack.c.b16 %v1089, %v1089
      %v1108 = vpack.c.b16 %v1090, %v1090
      %v1109 = vpack.c.b16 %v1091, %v1091
      %v1110 = vpack.c.b16 %v1092, %v1092
      %v1111 = vpack.c.b16 %v1093, %v1093
      %v1112 = vpack.c.b16 %v1094, %v1094
      %v1113 = vpack.c.b16 %v1095, %v1095
      %v1114 = vpack.c.b16 %v1096, %v1096
      %v1115 = vpack.c.b16 %v1097, %v1097
      %v1116 = vpack.c.b16 %v1098, %v1098
      %v1117 = vpack.c.b16 %v1099, %v1099
      %v1118 = vpack.c.b16 %v1100, %v1100
      %v1119 = vpack.c.b16 %v1101, %v1101
      %v1120 = vpack.c.b16 %v1102, %v1102
      %vm1139 = vcmask 257024
      %1140 = vst.msk [vmem:[%s219] sm:$0xf] %vm1139, %v1103
      %1141 = vst.msk [vmem:[%s219 + $0x4] sm:$0xf] %vm1139, %v1104
      %1142 = vst.msk [vmem:[%s219 + $0x8] sm:$0xf] %vm1139, %v1105
      %1143 = vst.msk [vmem:[%s219 + $0xc] sm:$0xf] %vm1139, %v1106
      %1144 = vst.msk [vmem:[%s219 + $0x10] sm:$0xf] %vm1139, %v1107
      %1145 = vst.msk [vmem:[%s219 + $0x14] sm:$0xf] %vm1139, %v1108
      %1146 = vst.msk [vmem:[%s219 + $0x18] sm:$0xf] %vm1139, %v1109
      %1147 = vst.msk [vmem:[%s219 + $0x1c] sm:$0xf] %vm1139, %v1110
      %1148 = vst.msk [vmem:[%s219 + $0x20] sm:$0xf] %vm1139, %v1111
      %1149 = vst.msk [vmem:[%s219 + $0x24] sm:$0xf] %vm1139, %v1112
      %1150 = vst.msk [vmem:[%s219 + $0x28] sm:$0xf] %vm1139, %v1113
      %1151 = vst.msk [vmem:[%s219 + $0x2c] sm:$0xf] %vm1139, %v1114
      %1152 = vst.msk [vmem:[%s219 + $0x30] sm:$0xf] %vm1139, %v1115
      %1153 = vst.msk [vmem:[%s219 + $0x34] sm:$0xf] %vm1139, %v1116
      %1154 = vst.msk [vmem:[%s219 + $0x38] sm:$0xf] %vm1139, %v1117
      %1155 = vst.msk [vmem:[%s219 + $0x3c] sm:$0xf] %vm1139, %v1118
      %1156 = vst.msk [vmem:[%s219 + $0x40] sm:$0xf] %vm1139, %v1119
      %1157 = vst.msk [vmem:[%s219 + $0x44] sm:$0xf] %vm1139, %v1120
      %s1158 = smul.u32 18, %s20
      %p1159 = scmp.lt.s32.totalorder %s19, 1
      %s1160 = scalar_select %p1159, %s19, 1
      %p1161 = scmp.lt.s32.totalorder %s1158, 35
      %s1162 = scalar_select %p1161, %s1158, 35
      %s1163 = smul.addr %s1160, 36
      %s1164 = sadd.s32 %s1162, %s1163
      %s1165 = smul.addr %s1164, 4
      %s1166 = scalar_lea.vmem %s4, %s1165
      // Predicated region
      $region37: #{up_conv_forward.1} parent=35 // pred_check
        %p1167 = pneg %p136
      $region38: #{up_conv_forward.1} parent=35 // pred_check_branch
        %1169 = sbr.rel (%p1167) target = $region40
      $region39: #{up_conv_forward.1} parent=35 // pred_region
        %s1170 = smul.u32 18, %s20
      $region40: #{up_conv_forward.1} parent=35 // pred_fallthru
        _
    $region36: #{up_conv_forward.1} parent=5 // pred_fallthru
      _
    %p1171 = scmp.le.s32.totalorder 2, %s10
    // Predicated region
    $region41: #{up_conv_forward.1} parent=5 // pred_check
      %p1172 = pneg %p1171
    $region42: #{up_conv_forward.1} parent=5 // pred_check_branch
      %1174 = sbr.rel (%p1172) target = $region44
    $region43: #{up_conv_forward.1} parent=5 // pred_region
      %s1175 = ssub.s32 %s10, 2
      // Predicated region
      $region45: #{up_conv_forward.1} parent=43 // pred_check
        %p1176 = pneg %p142
      $region46: #{up_conv_forward.1} parent=43 // pred_check_branch
        %1178 = sbr.rel (%p1176) target = $region48
      $region47: #{up_conv_forward.1} parent=43 // pred_region
        %s1179 = smul.u32 18, %s22
        %p1180 = scmp.lt.s32.totalorder %s21, 1
        %s1181 = scalar_select %p1180, %s21, 1
        %p1182 = scmp.lt.s32.totalorder %s1179, 35
        %s1183 = scalar_select %p1182, %s1179, 35
        %s1184 = smul.addr %s1181, 36
        %s1185 = sadd.s32 %s1183, %s1184
        %s1186 = smul.addr %s1185, 4
        %s1187 = scalar_lea.vmem %s4, %s1186
      $region48: #{up_conv_forward.1} parent=43 // pred_fallthru
        _
    $region44: #{up_conv_forward.1} parent=5 // pred_fallthru
      _
  $region6: #{up_conv_forward.1} parent=0 // loop_footer
    %s14 = sadd.s32 1, %s10
  $region7: #{up_conv_forward.1} parent=0 // loop_footer_branch
    %9 = sbr.rel target = $region3
  $region8: #{up_conv_forward.1} parent=0 // loop_exit
    _

</llo_original>
